<compile_context>
chip_gen: v6e
topology: v6e:2x2x1
jax: 0.10.0
libtpu: 0.0.40
codegen_flags: <defaults>
</compile_context>

<pallas_src>
import math

import jax
import jax.numpy as jnp
from jax.experimental import pallas as pl
from jax.experimental.pallas import tpu as pltpu


# --------------------------------------------------------------------------
# Pallas kernel: direct HBM -> HBM DMA copy (no VMEM staging, no grid).
# --------------------------------------------------------------------------
def _hbm_copy_kernel(x_hbm, o_hbm, sem):
    cp = pltpu.make_async_copy(x_hbm, o_hbm, sem)
    cp.start()
    cp.wait()


def _materialized_copy(x):
    """Identity copy of `x` via a single HBM->HBM DMA (runs at HBM roofline)."""
    return pl.pallas_call(
        _hbm_copy_kernel,
        out_shape=jax.ShapeDtypeStruct(x.shape, x.dtype),
        in_specs=[pl.BlockSpec(memory_space=pl.ANY)],   # raw HBM ref, no auto-DMA
        out_specs=pl.BlockSpec(memory_space=pl.ANY),    # raw HBM ref, no auto-DMA
        scratch_shapes=[pltpu.SemaphoreType.DMA(())],
    )(x)


# --------------------------------------------------------------------------
# Shape handling (torch .view semantics, including a single -1).
# --------------------------------------------------------------------------
def _resolve_shape(feat, target_shape):
    target_shape = tuple(int(s) for s in target_shape)
    if -1 in target_shape:
        assert target_shape.count(-1) == 1, "only one -1 allowed in view shape"
        known = math.prod(s for s in target_shape if s != -1)
        assert feat % known == 0, "cannot infer -1 dimension"
        target_shape = tuple(feat // known if s == -1 else s for s in target_shape)
    assert math.prod(target_shape) == feat, (
        f"view shape {target_shape} incompatible with {feat} elements per item"
    )
    return target_shape


class View:
    """JAX/Pallas equivalent of the PyTorch View module.

    By default the forward pass is the metadata-only reshape (exactly what
    torch .view on a contiguous tensor is).  Pass `materialize=True` to force
    a fresh HBM buffer written by the Pallas DMA-copy kernel.
    """

    def __init__(self, *shape):
        self.shape = shape  # per-item target shape (may contain -1)

    def __call__(self, x, materialize=False):
        batch = x.shape[0]
        feat = math.prod(x.shape[1:]) if x.ndim > 1 else 1
        target = _resolve_shape(feat, self.shape)
        out_shape = (batch,) + target

        # Row-major reshape: zero HBM traffic, identical element order to
        # torch .view on a contiguous tensor.  This is the default (and the
        # fastest possible) path.
        y = jnp.reshape(x, out_shape)
        if not materialize:
            return y

        # Explicitly requested materialized copy: single HBM->HBM DMA.
        return _materialized_copy(y)


if __name__ == "__main__":
    key = jax.random.PRNGKey(0)

    # Small NCHW input consistent with a CIFAR-style feature map.
    B, C, H, W = 2, 4, 16, 16
    x = jax.random.normal(key, (B, C, H, W), dtype=jnp.float32)

    # ---- Default path: metadata-only reshape (the recommended zero-cost view).
    view = View(-1)
    y = jax.block_until_ready(view(x))
    y_ref = jnp.reshape(x, (B, C * H * W))
    assert y.shape == (B, C * H * W), y.shape
    assert y.dtype == x.dtype
    assert bool(jnp.all(y == y_ref))

    # ---- Pallas path: materialized copy via a single HBM->HBM DMA.
    y_mat = jax.block_until_ready(view(x, materialize=True))
    assert y_mat.shape == (B, C * H * W), y_mat.shape
    assert y_mat.dtype == x.dtype
    assert bool(jnp.all(y_mat == y_ref))

    # Multi-dim target shape: (C*H, W), also through the Pallas DMA copy.
    view2 = View(C * H, W)
    y2 = jax.block_until_ready(view2(x, materialize=True))
    assert y2.shape == (B, C * H, W), y2.shape
    assert bool(jnp.all(y2 == jnp.reshape(x, (B, C * H, W))))

    # Awkward (non-128-aligned) total: default zero-copy path handles anything.
    x_odd = jax.random.normal(key, (2, 3, 5, 7), dtype=jnp.float32)
    y3 = jax.block_until_ready(View(-1)(x_odd))
    assert y3.shape == (2, 105)
    assert bool(jnp.all(y3 == jnp.reshape(x_odd, (2, 105))))

    print("KERNEL_OK")
</pallas_src>

<mosaic_0001>
module attributes {stable_mosaic.version = 11 : i64} {
  func.func @_hbm_copy_kernel(%arg0: memref<2x1024xf32, #tpu.memory_space<any>>, %arg1: memref<2x1024xf32, #tpu.memory_space<any>>, %arg2: memref<!tpu.dma_semaphore, #tpu.memory_space<semaphore_mem>>) attributes {dimension_semantics = [], scalar_prefetch = 0 : i64, scratch_operands = 1 : i64, tpu.core_type = #tpu.core_type<tc>} {
    tpu.enqueue_dma source(%arg0 : memref<2x1024xf32, #tpu.memory_space<any>>) target(%arg1 : memref<2x1024xf32, #tpu.memory_space<any>>) target_semaphore(%arg2 : memref<!tpu.dma_semaphore, #tpu.memory_space<semaphore_mem>>)
    tpu.wait_dma2 semaphore(%arg2 : memref<!tpu.dma_semaphore, #tpu.memory_space<semaphore_mem>>) src(%arg0 : memref<2x1024xf32, #tpu.memory_space<any>>) dst(%arg1 : memref<2x1024xf32, #tpu.memory_space<any>>)
    return
  }
}

</mosaic_0001>

<llo_original>
// kernel: tpu_custom_call.1
$region0: #{tpu_custom_call.1}
  #allocation0 [shape = 'u32[]', space=smem, size = 0x4, offset = 0x4, fixed_abs, tag = 'smem constant byte address 0x4 - core index']
  #allocation1 [shape = 'u32[144,128]{1,0:T(1,128)}', space=vmem, size = 0x12000, scoped, tag = 'internal scratch']
  #allocation2 [shape = 's32[1]{0}', space=sflag, size = 0x4, scoped, tag = 'scratch operand']
  #allocation3 [shape = 's32[]', space=sflag, size = 0x4, offset = 0, fixed_abs, tag = 'sflag constant byte address 0x0 - dummy sync flag']
  #allocation4 [shape = 'u32[0]{0}', space=smem, size = 0, offset = 0, fixed_abs, tag = 'smem constant byte address 0x0 - null']
  %s0 = inlined_call_operand.hbm [shape: f32[2,1024], index: 0, kind: input, shape index: {}]
  %s1 = inlined_call_operand.hbm [shape: f32[2,1024], index: 1, kind: output, shape index: {}]
  %s2 = sld [smem:[#allocation0]]
  $region2: #{tpu_custom_call.1} parent=0
    _
  %s4 = ssub.s32 1, %s2
  %s5 = scalar_select 0, %s4, %s2
  %s7 = sshll.u32 1, 14
  %s8 = sxor.u32 4294967295, %s7
  %12 = dma.general %s0, 256, %s1, [#allocation2], 131072, [#allocation4], 0, 0
  %s13 = smul.u32 2, 1
  %s14 = smul.u32 %s13, 8
  %s15 = sshll.u32 %s14, 4
  %16 = dma.done [#allocation2], %s15
  %17 = vsyncmov [#allocation2]
  %s18 = vpop.sfrf %17
  %p19 = scmp.eq.s32.totalorder %s18, 0
  %p20 = pneg %p19
  %22 = shalt.err (%p20)

</llo_original>
